<compile_context>
chip_gen: v7x
topology: tpu7x:2x2x1
jax: 0.10.0
libtpu: 0.0.40
codegen_flags: <defaults>
</compile_context>

<pallas_src>
import jax
import jax.numpy as jnp
from jax.experimental import pallas as pl
from jax.experimental.pallas import tpu as pltpu


# ----------------------------- small helpers -------------------------------

def _round_up(x, m):
    return ((x + m - 1) // m) * m


def _pad_gate_cols(w, H, Hp):
    """(…, 4H) -> (…, 4*Hp): gate block k goes to columns [k*Hp, k*Hp+H), rest zero."""
    parts = []
    for k in range(4):
        blk = w[..., k * H:(k + 1) * H]
        pad_width = [(0, 0)] * (w.ndim - 1) + [(0, Hp - H)]
        parts.append(jnp.pad(blk, pad_width))
    return jnp.concatenate(parts, axis=-1)


def _choose_row_tiling(R):
    """Return (R_pad, rb).  R is a multiple of 8.  Prefer MXU-friendly 256-row tiles for
    large R; never fall back to a single giant block for awkward (prime-ish) row counts."""
    if R <= 512:
        return R, R
    R_pad = _round_up(R, 256)
    return R_pad, 256


def _choose_col_tile(N, rb, K):
    """Largest lane-aligned column tile whose double-buffered working set stays well under
    the smallest default scoped-VMEM budget across generations (v5e: 16 MiB)."""
    budget = 12 << 20
    candidates = [t for t in (1024, 512, 256, 128) if N % t == 0]
    if not candidates:
        return N
    for tn in candidates:
        working = 2 * (rb * K * 2 + K * tn * 2 + tn * 4 + rb * tn * 4)
        if working <= budget:
            return tn
    return candidates[-1]


def _num_tensorcores():
    """Best-effort TensorCore count of the local device (2 on megacore parts, e.g. v7x)."""
    try:
        info = pltpu.get_tpu_info()
        for attr in ("num_cores", "core_count", "tensorcore_count", "num_tensorcores"):
            n = getattr(info, attr, None)
            if isinstance(n, int) and n > 0:
                return n
    except Exception:
        pass
    return 1


# ------------------------- Pallas kernel: matmul+bias -----------------------

def _matmul_bias_kernel(x_ref, w_ref, b_ref, o_ref):
    o_ref[...] = (jnp.dot(x_ref[...], w_ref[...],
                          preferred_element_type=jnp.float32)
                  + b_ref[...]).astype(o_ref.dtype)


def matmul_bias_pallas(x, w, b, out_dtype=jnp.float32):
    """x: (R, K) bf16, w: (K, N) bf16, b: (1, N) f32 -> (R, N) out_dtype.

    2-D fully parallel grid.  Rows are tiled at rb (<= 512; padded up to a 256-multiple when
    large), columns at tn so the (K, tn) weight slab + (rb, tn) f32 output stay double-buffered
    inside every generation's default scoped-VMEM budget (v5e 16 MiB .. v6e/v7x 32 MiB).
    """
    R, K = x.shape
    _, N = w.shape
    R_pad, rb = _choose_row_tiling(R)
    if R_pad != R:
        x = jnp.pad(x, ((0, R_pad - R), (0, 0)))
    tn = _choose_col_tile(N, rb, K)

    out = pl.pallas_call(
        _matmul_bias_kernel,
        out_shape=jax.ShapeDtypeStruct((R_pad, N), out_dtype),
        grid=(R_pad // rb, N // tn),
        in_specs=[
            pl.BlockSpec((rb, K), lambda i, j: (i, 0)),
            pl.BlockSpec((K, tn), lambda i, j: (0, j)),
            pl.BlockSpec((1, tn), lambda i, j: (0, j)),
        ],
        out_specs=pl.BlockSpec((rb, tn), lambda i, j: (i, j)),
        compiler_params=pltpu.CompilerParams(
            dimension_semantics=("parallel", "parallel")),
    )(x, w, b)
    return out if R_pad == R else out[:R]


# --------------------- Pallas kernel: serial LSTM recurrence ----------------

def _lstm_step_kernel(xg_ref, whh_ref, h_out_ref, h_sc, c_sc):
    """One LSTM timestep.  Grid = (batch_blocks, T); T is the serial ("arbitrary") axis.

    xg_ref    : (1, Bblk, 4*Hp) f32   this step's precomputed x_t @ W_ih + (b_ih + b_hh)
    whh_ref   : (Hp, 4*Hp)      bf16  recurrent weights (constant block index -> stays resident)
    h_out_ref : (1, Bblk, Hp)   bf16  hidden state written out for this timestep
    h_sc/c_sc : (Bblk, Hp)      f32   VMEM scratch carried across grid steps
    """
    t = pl.program_id(1)

    @pl.when(t == 0)
    def _():
        h_sc[...] = jnp.zeros_like(h_sc)
        c_sc[...] = jnp.zeros_like(c_sc)

    Hp = whh_ref.shape[0]
    gates = xg_ref[0] + jnp.dot(h_sc[...].astype(jnp.bfloat16), whh_ref[...],
                                preferred_element_type=jnp.float32)
    # gate slices are lane-aligned because Hp is a multiple of 128
    i_g = jax.nn.sigmoid(gates[:, 0 * Hp:1 * Hp])
    f_g = jax.nn.sigmoid(gates[:, 1 * Hp:2 * Hp])
    g_g = jnp.tanh(gates[:, 2 * Hp:3 * Hp])
    o_g = jax.nn.sigmoid(gates[:, 3 * Hp:4 * Hp])
    c_new = f_g * c_sc[...] + i_g * g_g
    h_new = o_g * jnp.tanh(c_new)
    c_sc[...] = c_new
    h_sc[...] = h_new
    h_out_ref[0] = h_new.astype(h_out_ref.dtype)


def lstm_recurrence_pallas(xg, w_hh, n_batch_blocks=1):
    """xg: (T, Bp, 4*Hp) f32, w_hh: (Hp, 4*Hp) bf16 -> h_all (T, Bp, Hp) bf16.

    grid=(batch_blocks, T): Pallas auto-pipelines the per-step xg DMA-in / h writeback behind
    the serial h @ W_hh matmul; only O(B*4Hp) is VMEM-resident.  On megacore parts the leading
    "parallel" batch axis is sharded across TensorCores (each gets its own h/c scratch).
    """
    T, Bp, H4 = xg.shape
    Hp = w_hh.shape[0]
    Bblk = Bp // n_batch_blocks
    # NOTE: for very large Hp the (Hp, 4*Hp) bf16 recurrent weight can be single-buffered
    # (constant block index) to halve its VMEM footprint if scoped VMEM ever becomes tight.
    return pl.pallas_call(
        _lstm_step_kernel,
        out_shape=jax.ShapeDtypeStruct((T, Bp, Hp), jnp.bfloat16),
        grid=(n_batch_blocks, T),
        in_specs=[
            pl.BlockSpec((1, Bblk, H4), lambda b, t: (t, b, 0)),
            pl.BlockSpec((Hp, H4), lambda b, t: (0, 0)),
        ],
        out_specs=pl.BlockSpec((1, Bblk, Hp), lambda b, t: (t, b, 0)),
        scratch_shapes=[
            pltpu.VMEM((Bblk, Hp), jnp.float32),   # h carry
            pltpu.VMEM((Bblk, Hp), jnp.float32),   # c carry
        ],
        compiler_params=pltpu.CompilerParams(
            dimension_semantics=("parallel", "arbitrary")),
    )(xg, w_hh)


# ------------------------------- the module ---------------------------------

class DecoderRNNPallas:
    """JAX/Pallas port of the PyTorch DecoderRNN forward pass (num_layers=1)."""

    def __init__(self, embed_size, hidden_size, vocab_size, key):
        self.embed_size = embed_size
        self.hidden_size = hidden_size
        self.vocab_size = vocab_size

        ks = jax.random.split(key, 7)
        s = 0.1
        H, V, E = hidden_size, vocab_size, embed_size
        # nn.Embedding(vocab_size, embed_size)
        self.emb_table = s * jax.random.normal(ks[0], (V, E), jnp.float32)
        # nn.LSTM(embed_size, hidden_size, 1, batch_first=True)
        # stored transposed relative to PyTorch: (in, 4H) so kernel does x @ W.
        # Gate order (i, f, g, o) matches PyTorch.
        self.w_ih = s * jax.random.normal(ks[1], (E, 4 * H), jnp.float32)
        self.w_hh = s * jax.random.normal(ks[2], (H, 4 * H), jnp.float32)
        b_ih = s * jax.random.normal(ks[3], (4 * H,), jnp.float32)
        b_hh = s * jax.random.normal(ks[4], (4 * H,), jnp.float32)
        self.b = b_ih + b_hh
        # nn.Linear(hidden_size, vocab_size)
        self.w_fc = s * jax.random.normal(ks[5], (H, V), jnp.float32)
        self.b_fc = s * jax.random.normal(ks[6], (V,), jnp.float32)

        # ---- padded / casted kernel-side parameters ----
        Hp = _round_up(H, 128)
        Vp = _round_up(V, 128)
        self.H_pad, self.V_pad = Hp, Vp

        self.w_ih_p = _pad_gate_cols(self.w_ih, H, Hp).astype(jnp.bfloat16)     # (E, 4Hp)
        w_hh_p = jnp.zeros((Hp, 4 * Hp), jnp.float32)
        w_hh_p = w_hh_p.at[:H].set(_pad_gate_cols(self.w_hh, H, Hp))
        self.w_hh_p = w_hh_p.astype(jnp.bfloat16)                               # (Hp, 4Hp)
        self.b_p = _pad_gate_cols(self.b.reshape(1, 4 * H), H, Hp)              # (1, 4Hp) f32
        w_fc_p = jnp.zeros((Hp, Vp), jnp.float32).at[:H, :V].set(self.w_fc)
        self.w_fc_p = w_fc_p.astype(jnp.bfloat16)                               # (Hp, Vp)
        self.b_fc_p = jnp.zeros((1, Vp), jnp.float32).at[0, :V].set(self.b_fc)  # (1, Vp) f32

    def forward(self, features, captions):
        # features: (B, E) float32, captions: (B, T_cap) int32
        B = features.shape[0]
        cap_emb = jnp.take(self.emb_table, captions[:, :-1], axis=0)        # (B, T-1, E)
        x = jnp.concatenate([features[:, None, :], cap_emb], axis=1)        # (B, T, E)
        T = x.shape[1]

        B_pad = _round_up(B, 8)
        if B_pad != B:
            x = jnp.pad(x, ((0, B_pad - B), (0, 0), (0, 0)))
        x_tbe = jnp.transpose(x, (1, 0, 2)).astype(jnp.bfloat16)            # (T, B_pad, E)
        x_rows = x_tbe.reshape(T * B_pad, self.embed_size)

        # Phase 1: input projection for all timesteps at once (parallel matmul).
        xg = matmul_bias_pallas(x_rows, self.w_ih_p, self.b_p)              # (T*B_pad, 4Hp) f32
        xg = xg.reshape(T, B_pad, 4 * self.H_pad)

        # Phase 2: serial LSTM recurrence, pipelined over T; batch-parallel only when the
        # device has >= 2 TensorCores (v7x) and the batch splits into >= 2 sublane-aligned blocks.
        n_b_blocks = 2 if (_num_tensorcores() >= 2 and B_pad % 16 == 0) else 1
        h_all = lstm_recurrence_pallas(xg, self.w_hh_p, n_b_blocks)         # (T, B_pad, Hp) bf16

        # Phase 3: transpose the *small bf16* h (not the big f32 logits) into (B, T) row order
        # so the FC matmul writes logits directly in (B_pad, T, Vp) layout — no f32 transpose.
        h_bt = jnp.transpose(h_all, (1, 0, 2)).reshape(B_pad * T, self.H_pad)
        logits = matmul_bias_pallas(h_bt, self.w_fc_p, self.b_fc_p)         # (B_pad*T, Vp) f32
        logits = logits.reshape(B_pad, T, self.V_pad)
        return logits[:B, :, :self.vocab_size]                              # (B, T, V)


# ----------------------------- pure-JAX reference ---------------------------

def _reference_forward(model, features, captions):
    """Pure-JAX reference mirroring the kernel's bf16-matmul / f32-gate math."""
    bf16 = jnp.bfloat16
    cap_emb = jnp.take(model.emb_table, captions[:, :-1], axis=0)
    x = jnp.concatenate([features[:, None, :], cap_emb], axis=1)            # (B, T, E)
    B, T, E = x.shape
    H = model.hidden_size
    w_ih = model.w_ih.astype(bf16)
    w_hh = model.w_hh.astype(bf16)
    w_fc = model.w_fc.astype(bf16)

    xg_all = (jnp.dot(x.astype(bf16).reshape(B * T, E), w_ih,
                      preferred_element_type=jnp.float32).reshape(B, T, 4 * H)
              + model.b)

    h = jnp.zeros((B, H), jnp.float32)
    c = jnp.zeros((B, H), jnp.float32)
    outs = []
    for t in range(T):
        gates = xg_all[:, t] + jnp.dot(h.astype(bf16), w_hh,
                                       preferred_element_type=jnp.float32)
        i = jax.nn.sigmoid(gates[:, 0 * H:1 * H])
        f = jax.nn.sigmoid(gates[:, 1 * H:2 * H])
        g = jnp.tanh(gates[:, 2 * H:3 * H])
        o = jax.nn.sigmoid(gates[:, 3 * H:4 * H])
        c = f * c + i * g
        h = o * jnp.tanh(c)
        outs.append(jnp.dot(h.astype(bf16), w_fc,
                            preferred_element_type=jnp.float32) + model.b_fc)
    return jnp.stack(outs, axis=1)                                          # (B, T, V)


# ------------------------------------ main -----------------------------------

if __name__ == "__main__":
    key = jax.random.PRNGKey(0)
    k_model, k_feat, k_cap = jax.random.split(key, 3)

    batch = 2
    embed_size = 32
    hidden_size = 32
    vocab_size = 64
    cap_len = 9   # LSTM sequence length = 1 (features) + (cap_len - 1) embedded tokens = 9

    model = DecoderRNNPallas(embed_size, hidden_size, vocab_size, k_model)

    features = jax.random.normal(k_feat, (batch, embed_size), jnp.float32)
    captions = jax.random.randint(k_cap, (batch, cap_len), 0, vocab_size, jnp.int32)

    logits = jax.block_until_ready(model.forward(features, captions))

    ref = _reference_forward(model, features, captions)
    assert logits.shape == (batch, cap_len, vocab_size), logits.shape
    assert jnp.allclose(logits, ref, atol=3e-3, rtol=3e-3), \
        float(jnp.max(jnp.abs(logits - ref)))

    print("KERNEL_OK")
</pallas_src>

<mosaic_0001>
module attributes {stable_mosaic.version = 11 : i64} {
  func.func @_matmul_bias_kernel(%arg0: i32, %arg1: i32, %arg2: memref<72x32xbf16, #tpu.memory_space<vmem>>, %arg3: memref<32x512xbf16, #tpu.memory_space<vmem>>, %arg4: memref<1x512xf32, #tpu.memory_space<vmem>>, %arg5: memref<72x512xf32, #tpu.memory_space<vmem>>) attributes {dimension_semantics = [#tpu.dimension_semantics<parallel>, #tpu.dimension_semantics<parallel>], iteration_bounds = array<i64: 1, 1>, scalar_prefetch = 0 : i64, scratch_operands = 0 : i64, tpu.core_type = #tpu.core_type<tc>, window_params = [{transform_indices = @transform_0, window_bounds = array<i64: 72, 32>}, {transform_indices = @transform_1, window_bounds = array<i64: 32, 512>}, {transform_indices = @transform_2, window_bounds = array<i64: 1, 512>}, {transform_indices = @transform_3, window_bounds = array<i64: 72, 512>}]} {
    %c0 = arith.constant 0 : index
    %c0_0 = arith.constant 0 : index
    %0 = vector.load %arg2[%c0, %c0_0] : memref<72x32xbf16, #tpu.memory_space<vmem>>, vector<72x32xbf16>
    %c0_1 = arith.constant 0 : index
    %c0_2 = arith.constant 0 : index
    %1 = vector.load %arg3[%c0_1, %c0_2] : memref<32x512xbf16, #tpu.memory_space<vmem>>, vector<32x512xbf16>
    %cst = arith.constant dense<0.000000e+00> : vector<72x512xf32>
    %2 = tpu.matmul %0, %1, %cst {dimension_numbers = #tpu.dot_dimension_numbers<[1], [0], [0], [1], [0, 0, 1, 1], [], []>} : vector<72x32xbf16>, vector<32x512xbf16>, vector<72x512xf32> -> vector<72x512xf32>
    %c0_3 = arith.constant 0 : index
    %c0_4 = arith.constant 0 : index
    %3 = vector.load %arg4[%c0_3, %c0_4] : memref<1x512xf32, #tpu.memory_space<vmem>>, vector<1x512xf32>
    %4 = vector.broadcast %3 : vector<1x512xf32> to vector<72x512xf32>
    %5 = arith.addf %2, %4 : vector<72x512xf32>
    %c0_5 = arith.constant 0 : index
    %c0_6 = arith.constant 0 : index
    %6 = vector.load %arg5[%c0_5, %c0_6] : memref<72x512xf32, #tpu.memory_space<vmem>>, vector<72x512xf32>
    tpu.vector_store %arg5[%c0_5, %c0_6], %5 {strides = array<i32>} : memref<72x512xf32, #tpu.memory_space<vmem>>, vector<72x512xf32>,
    return
  }
  func.func @transform_0(%arg0: i32, %arg1: i32) -> (i32, i32) {
    %c0_i32 = arith.constant 0 : i32
    %c0_i32_0 = arith.constant 0 : i32
    return %arg0, %c0_i32 : i32, i32
  }
  func.func @transform_1(%arg0: i32, %arg1: i32) -> (i32, i32) {
    %c0_i32 = arith.constant 0 : i32
    %c0_i32_0 = arith.constant 0 : i32
    return %c0_i32, %arg1 : i32, i32
  }
  func.func @transform_2(%arg0: i32, %arg1: i32) -> (i32, i32) {
    %c0_i32 = arith.constant 0 : i32
    %c0_i32_0 = arith.constant 0 : i32
    return %c0_i32, %arg1 : i32, i32
  }
  func.func @transform_3(%arg0: i32, %arg1: i32) -> (i32, i32) {
    %c0_i32 = arith.constant 0 : i32
    return %arg0, %arg1 : i32, i32
  }
}

</mosaic_0001>

<llo_original>
// kernel: tpu_custom_call.1
$region0: #{tpu_custom_call.1}
  #allocation0 [shape = 'u32[]', space=smem, size = 0x4, offset = 0x4, fixed_abs, tag = 'smem constant byte address 0x4 - core index']
  #allocation1 [shape = 'u32[144,128]{1,0:T(1,128)}', space=vmem, size = 0x12000, scoped, tag = 'internal scratch']
  %s0 = inlined_call_operand.vmem [shape: bf16[72,32], index: 0, kind: input, shape index: {}]
  %s1 = inlined_call_operand.hbm [shape: bf16[32,512], index: 1, kind: input, shape index: {}]
  %s2 = inlined_call_operand.vmem [shape: f32[1,512], index: 2, kind: input, shape index: {}]
  %s3 = inlined_call_operand.hbm [shape: f32[72,512], index: 3, kind: output, shape index: {}]
  %s4 = sld [smem:[#allocation0]]
  $region26: #{tpu_custom_call.1} parent=0
    _
  %s6 = ssub.s32 1, %s4
  %s7 = scalar_select 0, %s6, %s4
  $region1: #{tpu_custom_call.1} parent=0
    #allocation2 [shape = 'u8[32768]{0}', space=vmem, size = 0x8000, scoped, tag = 'input window, operand 1, single buffered']
    #allocation3 [shape = 's32[1]{0}', space=sflag, size = 0x4, scoped, tag = 'scoped memory for tpu_custom_call.1']
    #allocation4 [shape = 's32[1]{0}', space=sflag, size = 0x4, scoped, tag = 'scoped memory for tpu_custom_call.1']
    #allocation5 [shape = 'u8[147456]{0}', space=vmem, size = 0x24000, scoped, tag = 'output window, operand 0, single buffered']
    %8 = vsyncpa [#allocation3], 0
    %9 = vsyncpa [#allocation4], 0
    // Predicated region
    $region2: #{tpu_custom_call.1} parent=1 // pred_check
      _
    $region3: #{tpu_custom_call.1} parent=1 // pred_check_branch
      %11 = sbr.rel (0) target = $region5
    $region4: #{tpu_custom_call.1} parent=1 // pred_region
      _
    $region5: #{tpu_custom_call.1} parent=1 // pred_fallthru
      _
    // Predicated region
    $region6: #{tpu_custom_call.1} parent=1 // pred_check
      _
    $region7: #{tpu_custom_call.1} parent=1 // pred_check_branch
      %13 = sbr.rel (0) target = $region9
    $region8: #{tpu_custom_call.1} parent=1 // pred_region
      %s15 = ssub.s32 1024, 1024
      %16 = vsyncadd [#allocation3], %s15
      %s17 = sshll.u32 [#allocation2], 4
      %s18 = int_to_ptr.vmem [resolvable:$true] %s17
      %23 = dma.hbm_to_vmem [thread:$0]  %s1, 1024, %s18, [#allocation3], 256, 256, 16
    $region9: #{tpu_custom_call.1} parent=1 // pred_fallthru
      _
    // Predicated region
    $region10: #{tpu_custom_call.1} parent=1 // pred_check
      _
    $region11: #{tpu_custom_call.1} parent=1 // pred_check_branch
      %25 = sbr.rel (0) target = $region13
    $region12: #{tpu_custom_call.1} parent=1 // pred_region
      _
    $region13: #{tpu_custom_call.1} parent=1 // pred_fallthru
      _
    // Predicated region
    $region14: #{tpu_custom_call.1} parent=1 // pred_check
      _
    $region15: #{tpu_custom_call.1} parent=1 // pred_check_branch
      %27 = sbr.rel (0) target = $region17
    $region16: #{tpu_custom_call.1} parent=1 // pred_region
      %28 = dma.done [#allocation3], 1024
    $region17: #{tpu_custom_call.1} parent=1 // pred_fallthru
      _
    %v30 = vld [vmem:[%s0] sm:$0xf]
    %v31 = vld [vmem:[%s0 + $0x4] sm:$0xf]
    %v32 = vld [vmem:[%s0 + $0x8] sm:$0xf]
    %v33 = vld [vmem:[%s0 + $0xc] sm:$0xf]
    %v34 = vld [vmem:[%s0 + $0x10] sm:$0xf]
    %v35 = vld [vmem:[%s0 + $0x14] sm:$0xf]
    %v36 = vld [vmem:[%s0 + $0x18] sm:$0xf]
    %v37 = vld [vmem:[%s0 + $0x1c] sm:$0xf]
    %v38 = vld [vmem:[%s0 + $0x20] sm:$0xf]
    %v39 = vld [vmem:[#allocation2] sm:$0xff]
    %v40 = vld [vmem:[#allocation2 + $0x8] sm:$0xff]
    %v41 = vld [vmem:[#allocation2 + $0x10] sm:$0xff]
    %v42 = vld [vmem:[#allocation2 + $0x18] sm:$0xff]
    %v43 = vld [vmem:[#allocation2 + $0x20] sm:$0xff]
    %v44 = vld [vmem:[#allocation2 + $0x28] sm:$0xff]
    %v45 = vld [vmem:[#allocation2 + $0x30] sm:$0xff]
    %v46 = vld [vmem:[#allocation2 + $0x38] sm:$0xff]
    %v47 = vld [vmem:[%s2] sm:$0xf]
    %v49 = vlaneseq
    %v50 = vshrl.u32 %v49, 7
    %v51 = vsub.s32 0, %v50
    %v52 = vrot.slane %v47, %v51
    %v53 = vlaneseq
    %v54 = vshrl.u32 %v53, 7
    %v55 = vsub.s32 1, %v54
    %v56 = vrot.slane %v47, %v55
    %v57 = vlaneseq
    %v58 = vshrl.u32 %v57, 7
    %v59 = vsub.s32 2, %v58
    %v60 = vrot.slane %v47, %v59
    %v61 = vlaneseq
    %v62 = vshrl.u32 %v61, 7
    %v63 = vsub.s32 3, %v62
    %v64 = vrot.slane %v47, %v63
    %v78 = vunpack.c.l.b16 %v30
    %v79 = vunpack.c.l.b16 %v31
    %v80 = vunpack.c.l.b16 %v32
    %v81 = vunpack.c.l.b16 %v33
    %v82 = vunpack.c.l.b16 %v34
    %v83 = vunpack.c.l.b16 %v35
    %v84 = vunpack.c.l.b16 %v36
    %v85 = vunpack.c.l.b16 %v37
    %v86 = vunpack.c.l.b16 %v38
    %v87 = vpack.c.b16 %v79, %v78
    %v88 = vpack.c.b16 %v81, %v80
    %v89 = vpack.c.b16 %v83, %v82
    %v90 = vpack.c.b16 %v85, %v84
    %v91 = vpack.c.b16 %v86, %v86
    %v100 = vunpack.c.l.b16 %v39
    %v101 = vunpack.c.h.b16 %v39
    %v102 = vunpack.c.l.b16 %v40
    %v103 = vunpack.c.h.b16 %v40
    %v104 = vunpack.c.l.b16 %v41
    %v105 = vunpack.c.h.b16 %v41
    %v106 = vunpack.c.l.b16 %v42
    %v107 = vunpack.c.h.b16 %v42
    %v108 = vunpack.c.l.b16 %v43
    %v109 = vunpack.c.h.b16 %v43
    %v110 = vunpack.c.l.b16 %v44
    %v111 = vunpack.c.h.b16 %v44
    %v112 = vunpack.c.l.b16 %v45
    %v113 = vunpack.c.h.b16 %v45
    %v114 = vunpack.c.l.b16 %v46
    %v115 = vunpack.c.h.b16 %v46
    %v116 = vpack.c.b16 %v104, %v100
    %v117 = vpack.c.b16 %v105, %v101
    %v118 = vpack.c.b16 %v106, %v102
    %v119 = vpack.c.b16 %v107, %v103
    %v120 = vpack.c.b16 %v112, %v108
    %v121 = vpack.c.b16 %v113, %v109
    %v122 = vpack.c.b16 %v114, %v110
    %v123 = vpack.c.b16 %v115, %v111
    %vm132 = vcmask 261120
    %v134 = vsel %vm132, %v87, 0
    %v137 = vsel %vm132, %v88, 0
    %v140 = vsel %vm132, %v89, 0
    %v143 = vsel %vm132, %v90, 0
    %v146 = vsel %vm132, %v91, 0
    %148 = vmatprep.subr.bf16.mxu0 %v117
    %149 = vmatpush1.bf16.msra.mxu0 %v116
    %150 = vmatprep.subr.bf16.mxu0 %v121
    %151 = vmatpush1.bf16.msra.mxu0 %v120
    %152 = vmatprep.subr.bf16.mxu0 0
    %153 = vmatpush1.bf16.msra.mxu0 0
    %154 = vmatprep.subr.bf16.mxu0 0
    %155 = vmatpush1.bf16.msra.mxu0 0
    %156 = vmatprep.subr.bf16.mxu0 0
    %157 = vmatpush1.bf16.msra.mxu0 0
    %158 = vmatprep.subr.bf16.mxu0 0
    %159 = vmatpush1.bf16.msra.mxu0 0
    %160 = vmatprep.subr.bf16.mxu0 0
    %161 = vmatpush1.bf16.msra.mxu0 0
    %162 = vmatprep.subr.bf16.mxu0 0
    %163 = vmatpush1.bf16.msra.mxu0 0
    %164 = vmatprep.subr.bf16.mxu0 0
    %165 = vmatpush1.bf16.msra.mxu0 0
    %166 = vmatprep.subr.bf16.mxu0 0
    %167 = vmatpush1.bf16.msra.mxu0 0
    %168 = vmatprep.subr.bf16.mxu0 0
    %169 = vmatpush1.bf16.msra.mxu0 0
    %170 = vmatprep.subr.bf16.mxu0 0
    %171 = vmatpush1.bf16.msra.mxu0 0
    %172 = vmatprep.subr.bf16.mxu0 0
    %173 = vmatpush1.bf16.msra.mxu0 0
    %174 = vmatprep.subr.bf16.mxu0 0
    %175 = vmatpush1.bf16.msra.mxu0 0
    %176 = vmatprep.subr.bf16.mxu0 0
    %177 = vmatpush1.bf16.msra.mxu0 0
    %178 = vmatprep.subr.bf16.mxu0 0
    %179 = vmatpush1.bf16.msra.mxu0 0
    %180 = vmatprep.mubr.bf16.mxu0 0
    %181 = vmatmul.mubr.bf16.gmra.mrb[0].mxu0 %v134
    %v182 = vpop.f32.mrb[0].mxu0
    %v183 = vadd.f32 %v52, %v182
    %v184 = vpop.f32.mrb[0].mxu0
    %v185 = vadd.f32 %v56, %v184
    %v186 = vpop.f32.mrb[0].mxu0
    %v187 = vadd.f32 %v52, %v186
    %v188 = vpop.f32.mrb[0].mxu0
    %v189 = vadd.f32 %v56, %v188
    %190 = vmatprep.mubr.bf16.mxu0 0
    %191 = vmatmul.mubr.bf16.gmra.mrb[0].mxu0 %v137
    %v192 = vpop.f32.mrb[0].mxu0
    %v193 = vadd.f32 %v52, %v192
    %v194 = vpop.f32.mrb[0].mxu0
    %v195 = vadd.f32 %v56, %v194
    %v196 = vpop.f32.mrb[0].mxu0
    %v197 = vadd.f32 %v52, %v196
    %v198 = vpop.f32.mrb[0].mxu0
    %v199 = vadd.f32 %v56, %v198
    %200 = vmatprep.mubr.bf16.mxu0 0
    %201 = vmatmul.mubr.bf16.gmra.mrb[0].mxu0 %v140
    %v202 = vpop.f32.mrb[0].mxu0
    %v203 = vadd.f32 %v52, %v202
    %v204 = vpop.f32.mrb[0].mxu0
    %v205 = vadd.f32 %v56, %v204
    %v206 = vpop.f32.mrb[0].mxu0
    %v207 = vadd.f32 %v52, %v206
    %v208 = vpop.f32.mrb[0].mxu0
    %v209 = vadd.f32 %v56, %v208
    %210 = vmatprep.mubr.bf16.mxu0 0
    %211 = vmatmul.mubr.bf16.gmra.mrb[0].mxu0 %v143
    %v212 = vpop.f32.mrb[0].mxu0
    %v213 = vadd.f32 %v52, %v212
    %v214 = vpop.f32.mrb[0].mxu0
    %v215 = vadd.f32 %v56, %v214
    %v216 = vpop.f32.mrb[0].mxu0
    %v217 = vadd.f32 %v52, %v216
    %v218 = vpop.f32.mrb[0].mxu0
    %v219 = vadd.f32 %v56, %v218
    %220 = vmatprep.mubr.bf16.mxu0 0
    %221 = vmatmul.mubr.bf16.gmra.mrb[0].mxu0 %v146
    %v222 = vpop.f32.mrb[0].mxu0
    %v223 = vadd.f32 %v52, %v222
    %v224 = vpop.f32.mrb[0].mxu0
    %v225 = vadd.f32 %v56, %v224
    %v226 = vpop.f32.mrb[0].mxu0
    %v227 = vpop.f32.mrb[0].mxu0
    %228 = vdwg.mxu0
    %229 = vmatprep.subr.bf16.mxu0 %v119
    %230 = vmatpush1.bf16.msra.mxu0 %v118
    %231 = vmatprep.subr.bf16.mxu0 %v123
    %232 = vmatpush1.bf16.msra.mxu0 %v122
    %233 = vmatprep.subr.bf16.mxu0 0
    %234 = vmatpush1.bf16.msra.mxu0 0
    %235 = vmatprep.subr.bf16.mxu0 0
    %236 = vmatpush1.bf16.msra.mxu0 0
    %237 = vmatprep.subr.bf16.mxu0 0
    %238 = vmatpush1.bf16.msra.mxu0 0
    %239 = vmatprep.subr.bf16.mxu0 0
    %240 = vmatpush1.bf16.msra.mxu0 0
    %241 = vmatprep.subr.bf16.mxu0 0
    %242 = vmatpush1.bf16.msra.mxu0 0
    %243 = vmatprep.subr.bf16.mxu0 0
    %244 = vmatpush1.bf16.msra.mxu0 0
    %245 = vmatprep.subr.bf16.mxu0 0
    %246 = vmatpush1.bf16.msra.mxu0 0
    %247 = vmatprep.subr.bf16.mxu0 0
    %248 = vmatpush1.bf16.msra.mxu0 0
    %249 = vmatprep.subr.bf16.mxu0 0
    %250 = vmatpush1.bf16.msra.mxu0 0
    %251 = vmatprep.subr.bf16.mxu0 0
    %252 = vmatpush1.bf16.msra.mxu0 0
    %253 = vmatprep.subr.bf16.mxu0 0
    %254 = vmatpush1.bf16.msra.mxu0 0
    %255 = vmatprep.subr.bf16.mxu0 0
    %256 = vmatpush1.bf16.msra.mxu0 0
    %257 = vmatprep.subr.bf16.mxu0 0
    %258 = vmatpush1.bf16.msra.mxu0 0
    %259 = vmatprep.subr.bf16.mxu0 0
    %260 = vmatpush1.bf16.msra.mxu0 0
    %261 = vmatprep.mubr.bf16.mxu0 0
    %262 = vmatmul.mubr.bf16.gmra.mrb[0].mxu0 %v134
    %v263 = vpop.f32.mrb[0].mxu0
    %v264 = vadd.f32 %v60, %v263
    %v265 = vpop.f32.mrb[0].mxu0
    %v266 = vadd.f32 %v64, %v265
    %v267 = vpop.f32.mrb[0].mxu0
    %v268 = vadd.f32 %v60, %v267
    %v269 = vpop.f32.mrb[0].mxu0
    %v270 = vadd.f32 %v64, %v269
    %271 = vmatprep.mubr.bf16.mxu0 0
    %272 = vmatmul.mubr.bf16.gmra.mrb[0].mxu0 %v137
    %v273 = vpop.f32.mrb[0].mxu0
    %v274 = vadd.f32 %v60, %v273
    %v275 = vpop.f32.mrb[0].mxu0
    %v276 = vadd.f32 %v64, %v275
    %v277 = vpop.f32.mrb[0].mxu0
    %v278 = vadd.f32 %v60, %v277
    %v279 = vpop.f32.mrb[0].mxu0
    %v280 = vadd.f32 %v64, %v279
    %281 = vmatprep.mubr.bf16.mxu0 0
    %282 = vmatmul.mubr.bf16.gmra.mrb[0].mxu0 %v140
    %v283 = vpop.f32.mrb[0].mxu0
    %v284 = vadd.f32 %v60, %v283
    %v285 = vpop.f32.mrb[0].mxu0
    %v286 = vadd.f32 %v64, %v285
    %v287 = vpop.f32.mrb[0].mxu0
    %v288 = vadd.f32 %v60, %v287
    %v289 = vpop.f32.mrb[0].mxu0
    %v290 = vadd.f32 %v64, %v289
    %291 = vmatprep.mubr.bf16.mxu0 0
    %292 = vmatmul.mubr.bf16.gmra.mrb[0].mxu0 %v143
    %v293 = vpop.f32.mrb[0].mxu0
    %v294 = vadd.f32 %v60, %v293
    %v295 = vpop.f32.mrb[0].mxu0
    %v296 = vadd.f32 %v64, %v295
    %v297 = vpop.f32.mrb[0].mxu0
    %v298 = vadd.f32 %v60, %v297
    %v299 = vpop.f32.mrb[0].mxu0
    %v300 = vadd.f32 %v64, %v299
    %301 = vmatprep.mubr.bf16.mxu0 0
    %302 = vmatmul.mubr.bf16.gmra.mrb[0].mxu0 %v146
    %v303 = vpop.f32.mrb[0].mxu0
    %v304 = vadd.f32 %v60, %v303
    %v305 = vpop.f32.mrb[0].mxu0
    %v306 = vadd.f32 %v64, %v305
    %v307 = vpop.f32.mrb[0].mxu0
    %v308 = vpop.f32.mrb[0].mxu0
    %309 = vdwg.mxu0
    %310 = vst [vmem:[#allocation5] sm:$0xff] %v183
    %311 = vst [vmem:[#allocation5 + $0x8] sm:$0xff] %v185
    %312 = vst [vmem:[#allocation5 + $0x10] sm:$0xff] %v264
    %313 = vst [vmem:[#allocation5 + $0x18] sm:$0xff] %v266
    %314 = vst [vmem:[#allocation5 + $0x20] sm:$0xff] %v187
    %315 = vst [vmem:[#allocation5 + $0x28] sm:$0xff] %v189
    %316 = vst [vmem:[#allocation5 + $0x30] sm:$0xff] %v268
    %317 = vst [vmem:[#allocation5 + $0x38] sm:$0xff] %v270
    %318 = vst [vmem:[#allocation5 + $0x40] sm:$0xff] %v193
    %319 = vst [vmem:[#allocation5 + $0x48] sm:$0xff] %v195
    %320 = vst [vmem:[#allocation5 + $0x50] sm:$0xff] %v274
    %321 = vst [vmem:[#allocation5 + $0x58] sm:$0xff] %v276
    %322 = vst [vmem:[#allocation5 + $0x60] sm:$0xff] %v197
    %323 = vst [vmem:[#allocation5 + $0x68] sm:$0xff] %v199
    %324 = vst [vmem:[#allocation5 + $0x70] sm:$0xff] %v278
    %325 = vst [vmem:[#allocation5 + $0x78] sm:$0xff] %v280
    %326 = vst [vmem:[#allocation5 + $0x80] sm:$0xff] %v203
    %327 = vst [vmem:[#allocation5 + $0x88] sm:$0xff] %v205
    %328 = vst [vmem:[#allocation5 + $0x90] sm:$0xff] %v284
    %329 = vst [vmem:[#allocation5 + $0x98] sm:$0xff] %v286
    %330 = vst [vmem:[#allocation5 + $0xa0] sm:$0xff] %v207
    %331 = vst [vmem:[#allocation5 + $0xa8] sm:$0xff] %v209
    %332 = vst [vmem:[#allocation5 + $0xb0] sm:$0xff] %v288
    %333 = vst [vmem:[#allocation5 + $0xb8] sm:$0xff] %v290
    %334 = vst [vmem:[#allocation5 + $0xc0] sm:$0xff] %v213
    %335 = vst [vmem:[#allocation5 + $0xc8] sm:$0xff] %v215
    %336 = vst [vmem:[#allocation5 + $0xd0] sm:$0xff] %v294
    %337 = vst [vmem:[#allocation5 + $0xd8] sm:$0xff] %v296
    %338 = vst [vmem:[#allocation5 + $0xe0] sm:$0xff] %v217
    %339 = vst [vmem:[#allocation5 + $0xe8] sm:$0xff] %v219
    %340 = vst [vmem:[#allocation5 + $0xf0] sm:$0xff] %v298
    %341 = vst [vmem:[#allocation5 + $0xf8] sm:$0xff] %v300
    %342 = vst [vmem:[#allocation5 + $0x100] sm:$0xff] %v223
    %343 = vst [vmem:[#allocation5 + $0x108] sm:$0xff] %v225
    %344 = vst [vmem:[#allocation5 + $0x110] sm:$0xff] %v304
    %345 = vst [vmem:[#allocation5 + $0x118] sm:$0xff] %v306
    // Predicated region
    $region18: #{tpu_custom_call.1} parent=1 // pred_check
      _
    $region19: #{tpu_custom_call.1} parent=1 // pred_check_branch
      %347 = sbr.rel (0) target = $region21
    $region20: #{tpu_custom_call.1} parent=1 // pred_region
      %s349 = ssub.s32 4608, 4608
      %350 = vsyncadd [#allocation4], %s349
      %s351 = sshll.u32 [#allocation5], 4
      %s352 = int_to_ptr.vmem [resolvable:$true] %s351
      %357 = dma.vmem_to_hbm [thread:$0]  %s352, 4608, %s3, [#allocation4], 512, 512, 32
    $region21: #{tpu_custom_call.1} parent=1 // pred_fallthru
      _
    // Predicated region
    $region22: #{tpu_custom_call.1} parent=1 // pred_check
      _
    $region23: #{tpu_custom_call.1} parent=1 // pred_check_branch
      %359 = sbr.rel (0) target = $region25
    $region24: #{tpu_custom_call.1} parent=1 // pred_region
      %360 = dma.done [#allocation4], 4608
    $region25: #{tpu_custom_call.1} parent=1 // pred_fallthru
      _
    %361 = vsyncpa [#allocation3], 1
    %362 = vsyncpa [#allocation4], 1

</llo_original>
